<compile_context>
chip_gen: v7x
topology: tpu7x:2x2x1
jax: 0.10.0
libtpu: 0.0.40
codegen_flags: <defaults>
</compile_context>

<pallas_src>
import functools

import jax
import jax.numpy as jnp
from jax.experimental import pallas as pl
from jax.experimental.pallas import tpu as pltpu


def bottleneck_kernel(x_ref, w1_ref, b1_ref, w23_ref, b23_ref, o_ref, *,
                      seg_len):
    """One grid step: a (C_in, L_blk) lane slab (B_blk samples side by side)."""
    x = x_ref[...]                                    # (C_in, L_blk) f32

    # --- conv1: 1x1 conv + bias + ReLU (one MXU matmul) -------------------
    h = jnp.dot(w1_ref[...], x, preferred_element_type=jnp.float32)
    h = jnp.maximum(h + b1_ref[...], 0.0)             # (H, L_blk)

    H, L_blk = h.shape

    # --- build shifted copies for the k=3 'same' conv ---------------------
    # Single (1, L_blk) iota row, broadcast in the selects.  `pos` is the
    # position inside each sample so shifts are zeroed at per-sample edges
    # (this is both the zero padding and the no-cross-sample-leak mask).
    lane = jax.lax.broadcasted_iota(jnp.int32, (1, L_blk), 1)
    pos = lane if L_blk == seg_len else lane % seg_len

    # h[l-1] (zero at left edge of each sample): rotate toward higher lanes.
    h_left = jnp.where(pos >= 1, pltpu.roll(h, shift=1, axis=1), 0.0)
    # h[l+1] (zero at right edge): rotate by L_blk-1 (non-negative shift).
    h_right = jnp.where(pos <= seg_len - 2,
                        pltpu.roll(h, shift=L_blk - 1, axis=1), 0.0)

    # Stack the three taps along the contraction dim: (3H, L_blk).
    stacked = jnp.concatenate([h_left, h, h_right], axis=0)

    # --- fused conv2 + conv3: one (C_out, 3H) @ (3H, L_blk) matmul --------
    h3 = jnp.dot(w23_ref[...], stacked, preferred_element_type=jnp.float32)
    h3 = h3 + b23_ref[...]

    # --- identity residual + final ReLU -----------------------------------
    o_ref[...] = jnp.maximum(x + h3, 0.0).astype(o_ref.dtype)


def _choose_batch_block(n, c_in, c_out, length, itemsize=4):
    """Samples per grid step: big enough to amortize per-step overhead, but
    keep >= 2 parallel grid blocks (for v7x's two TensorCores) when N >= 2."""
    per_sample_bytes = (c_in + c_out) * length * itemsize
    target = 1 << 20                                   # ~1 MiB of in+out / step
    b = max(1, min(n, target // max(per_sample_bytes, 1)))
    if n >= 2:
        b = max(1, min(b, n // 2))
    while n % b:
        b -= 1
    return b


def conv_bottleneck_residual_block_1d(x, w1, b1, w2_taps, b2, w3, b3,
                                      batch_block=None):
    """x: (N, C_in, L) float32.  Returns (N, C_out, L) float32.

    w1: (H, C_in), b1: (H, 1)
    w2_taps: (3, H, H)   (tap-major: w2_taps[t] == torch_conv2_weight[:, :, t])
    b2: (H, 1)
    w3: (C_out, H), b3: (C_out, 1)
    """
    N, C_in, L = x.shape
    H = w1.shape[0]
    C_out = w3.shape[0]
    assert C_out == C_in, "identity residual path requires C_out == C_in"

    # Exact algebraic fusion of conv2 (k=3) and conv3 (1x1): no nonlinearity
    # between them.  W23 = [W3@W2_0 | W3@W2_1 | W3@W2_2], b23 = W3@b2 + b3.
    w23 = jnp.concatenate(
        [w3 @ w2_taps[0], w3 @ w2_taps[1], w3 @ w2_taps[2]], axis=1)  # (C_out,3H)
    b23 = w3 @ b2 + b3                                                # (C_out,1)

    # Fold batch into lanes: (N, C, L) -> (C, N*L).
    x2d = jnp.transpose(x, (1, 0, 2)).reshape(C_in, N * L)

    if batch_block is None:
        batch_block = _choose_batch_block(N, C_in, C_out, L)
    assert N % batch_block == 0
    L_blk = batch_block * L
    grid = (N // batch_block,)

    y2d = pl.pallas_call(
        functools.partial(bottleneck_kernel, seg_len=L),
        out_shape=jax.ShapeDtypeStruct((C_out, N * L), x.dtype),
        grid_spec=pltpu.PrefetchScalarGridSpec(
            num_scalar_prefetch=0,
            grid=grid,
            in_specs=[
                pl.BlockSpec((C_in, L_blk), lambda i: (0, i)),
                pl.BlockSpec((H, C_in), lambda i: (0, 0)),
                pl.BlockSpec((H, 1), lambda i: (0, 0)),
                pl.BlockSpec((C_out, 3 * H), lambda i: (0, 0)),
                pl.BlockSpec((C_out, 1), lambda i: (0, 0)),
            ],
            out_specs=pl.BlockSpec((C_out, L_blk), lambda i: (0, i)),
        ),
        compiler_params=pltpu.CompilerParams(
            dimension_semantics=("parallel",)),
    )(x2d, w1, b1, w23, b23)

    # Back to (N, C_out, L).
    return jnp.transpose(y2d.reshape(C_out, N, L), (1, 0, 2))


def reference_forward(x, w1, b1, w2_taps, b2, w3, b3):
    """Plain-JAX, unfused reference with the module's exact math."""
    N, C_in, L = x.shape
    h = jnp.maximum(jnp.einsum('hc,ncl->nhl', w1, x) + b1[None], 0.0)
    hp = jnp.pad(h, ((0, 0), (0, 0), (1, 1)))
    h2 = (jnp.einsum('oh,nhl->nol', w2_taps[0], hp[:, :, 0:L])
          + jnp.einsum('oh,nhl->nol', w2_taps[1], hp[:, :, 1:L + 1])
          + jnp.einsum('oh,nhl->nol', w2_taps[2], hp[:, :, 2:L + 2])
          + b2[None])
    h3 = jnp.einsum('oh,nhl->nol', w3, h2) + b3[None]
    return jnp.maximum(x + h3, 0.0)


if __name__ == "__main__":
    # Module hyperparameters.
    N, C_in, L = 2, 16, 128
    reduction_ratio = 4
    H = C_in // reduction_ratio          # hidden_channels = 4
    C_out = C_in                         # out_channels=None -> in_channels

    key = jax.random.PRNGKey(0)
    kx, k1, k2, k3, k4, k5, k6 = jax.random.split(key, 7)

    x = jax.random.normal(kx, (N, C_in, L), dtype=jnp.float32)

    # Deterministic synthetic parameters (Conv1d weight layout (out, in, k)).
    w1 = 0.1 * jax.random.normal(k1, (H, C_in), dtype=jnp.float32)      # k=1
    b1 = 0.1 * jax.random.normal(k2, (H, 1), dtype=jnp.float32)
    w2 = 0.1 * jax.random.normal(k3, (H, H, 3), dtype=jnp.float32)      # k=3
    b2 = 0.1 * jax.random.normal(k4, (H, 1), dtype=jnp.float32)
    w3 = 0.1 * jax.random.normal(k5, (C_out, H), dtype=jnp.float32)     # k=1
    b3 = 0.1 * jax.random.normal(k6, (C_out, 1), dtype=jnp.float32)

    # Tap-major layout: (3, H, H), w2_taps[t] == w2[:, :, t].
    w2_taps = jnp.transpose(w2, (2, 0, 1))

    y = conv_bottleneck_residual_block_1d(x, w1, b1, w2_taps, b2, w3, b3)
    y = jax.block_until_ready(y)

    y_ref = reference_forward(x, w1, b1, w2_taps, b2, w3, b3)
    assert y.shape == (N, C_out, L)
    assert jnp.allclose(y, y_ref, atol=1e-4, rtol=1e-4), "mismatch vs reference"

    print("KERNEL_OK")
</pallas_src>

<mosaic_0001>
module attributes {stable_mosaic.version = 11 : i64} {
  func.func @bottleneck_kernel(%arg0: i32, %arg1: memref<16x128xf32, #tpu.memory_space<vmem>>, %arg2: memref<4x16xf32, #tpu.memory_space<vmem>>, %arg3: memref<4x1xf32, #tpu.memory_space<vmem>>, %arg4: memref<16x12xf32, #tpu.memory_space<vmem>>, %arg5: memref<16x1xf32, #tpu.memory_space<vmem>>, %arg6: memref<16x128xf32, #tpu.memory_space<vmem>>) attributes {dimension_semantics = [#tpu.dimension_semantics<parallel>], iteration_bounds = array<i64: 2>, scalar_prefetch = 0 : i64, scratch_operands = 0 : i64, tpu.core_type = #tpu.core_type<tc>, window_params = [{transform_indices = @transform_0, window_bounds = array<i64: 16, 128>}, {pipeline_mode = #tpu.pipeline_mode<synchronous>, transform_indices = @transform_1, window_bounds = array<i64: 4, 16>}, {pipeline_mode = #tpu.pipeline_mode<synchronous>, transform_indices = @transform_2, window_bounds = array<i64: 4, 1>}, {pipeline_mode = #tpu.pipeline_mode<synchronous>, transform_indices = @transform_3, window_bounds = array<i64: 16, 12>}, {pipeline_mode = #tpu.pipeline_mode<synchronous>, transform_indices = @transform_4, window_bounds = array<i64: 16, 1>}, {transform_indices = @transform_5, window_bounds = array<i64: 16, 128>}]} {
    %c0 = arith.constant 0 : index
    %c0_0 = arith.constant 0 : index
    %0 = vector.load %arg1[%c0, %c0_0] : memref<16x128xf32, #tpu.memory_space<vmem>>, vector<16x128xf32>
    %c0_1 = arith.constant 0 : index
    %c0_2 = arith.constant 0 : index
    %1 = vector.load %arg2[%c0_1, %c0_2] : memref<4x16xf32, #tpu.memory_space<vmem>>, vector<4x16xf32>
    %cst = arith.constant dense<0.000000e+00> : vector<4x128xf32>
    %2 = tpu.matmul %1, %0, %cst {dimension_numbers = #tpu.dot_dimension_numbers<[1], [0], [0], [1], [0, 0, 1, 1], [], []>} : vector<4x16xf32>, vector<16x128xf32>, vector<4x128xf32> -> vector<4x128xf32>
    %c0_3 = arith.constant 0 : index
    %c0_4 = arith.constant 0 : index
    %3 = vector.load %arg3[%c0_3, %c0_4] : memref<4x1xf32, #tpu.memory_space<vmem>>, vector<4x1xf32>
    %4 = vector.broadcast %3 : vector<4x1xf32> to vector<4x128xf32>
    %5 = arith.addf %2, %4 : vector<4x128xf32>
    %cst_5 = arith.constant 0.000000e+00 : f32
    %6 = vector.broadcast %cst_5 : f32 to vector<4x128xf32>
    %7 = arith.maximumf %5, %6 : vector<4x128xf32>
    %8 = tpu.iota {dimensions = array<i32: 1>} : vector<1x128xi32>
    %c1_i32 = arith.constant 1 : i32
    %9 = vector.broadcast %c1_i32 : i32 to vector<1x128xi32>
    %10 = arith.cmpi sge, %8, %9 : vector<1x128xi32>
    %c1_i32_6 = arith.constant 1 : i32
    %11 = tpu.dynamic_rotate %7 by %c1_i32_6 dim 1 : vector<4x128xf32>, i32 -> vector<4x128xf32>
    %cst_7 = arith.constant 0.000000e+00 : f32
    %12 = vector.shape_cast %10 : vector<1x128xi1> to vector<1x128xi1>
    %13 = vector.broadcast %12 : vector<1x128xi1> to vector<4x128xi1>
    %14 = vector.broadcast %cst_7 : f32 to vector<4x128xf32>
    %15 = arith.select %13, %11, %14 : vector<4x128xi1>, vector<4x128xf32>
    %c126_i32 = arith.constant 126 : i32
    %16 = vector.broadcast %c126_i32 : i32 to vector<1x128xi32>
    %17 = arith.cmpi sle, %8, %16 : vector<1x128xi32>
    %c127_i32 = arith.constant 127 : i32
    %18 = tpu.dynamic_rotate %7 by %c127_i32 dim 1 : vector<4x128xf32>, i32 -> vector<4x128xf32>
    %cst_8 = arith.constant 0.000000e+00 : f32
    %19 = vector.shape_cast %17 : vector<1x128xi1> to vector<1x128xi1>
    %20 = vector.broadcast %19 : vector<1x128xi1> to vector<4x128xi1>
    %21 = vector.broadcast %cst_8 : f32 to vector<4x128xf32>
    %22 = arith.select %20, %18, %21 : vector<4x128xi1>, vector<4x128xf32>
    %23 = tpu.concatenate %15, %7, %22 in 0 : vector<4x128xf32>, vector<4x128xf32>, vector<4x128xf32> -> vector<12x128xf32>
    %c0_9 = arith.constant 0 : index
    %c0_10 = arith.constant 0 : index
    %24 = vector.load %arg4[%c0_9, %c0_10] : memref<16x12xf32, #tpu.memory_space<vmem>>, vector<16x12xf32>
    %cst_11 = arith.constant dense<0.000000e+00> : vector<16x128xf32>
    %25 = tpu.matmul %24, %23, %cst_11 {dimension_numbers = #tpu.dot_dimension_numbers<[1], [0], [0], [1], [0, 0, 1, 1], [], []>} : vector<16x12xf32>, vector<12x128xf32>, vector<16x128xf32> -> vector<16x128xf32>
    %c0_12 = arith.constant 0 : index
    %c0_13 = arith.constant 0 : index
    %26 = vector.load %arg5[%c0_12, %c0_13] : memref<16x1xf32, #tpu.memory_space<vmem>>, vector<16x1xf32>
    %27 = vector.broadcast %26 : vector<16x1xf32> to vector<16x128xf32>
    %28 = arith.addf %25, %27 : vector<16x128xf32>
    %29 = arith.addf %0, %28 : vector<16x128xf32>
    %cst_14 = arith.constant 0.000000e+00 : f32
    %30 = vector.broadcast %cst_14 : f32 to vector<16x128xf32>
    %31 = arith.maximumf %29, %30 : vector<16x128xf32>
    %c0_15 = arith.constant 0 : index
    %c0_16 = arith.constant 0 : index
    %32 = vector.load %arg6[%c0_15, %c0_16] : memref<16x128xf32, #tpu.memory_space<vmem>>, vector<16x128xf32>
    tpu.vector_store %arg6[%c0_15, %c0_16], %31 {strides = array<i32>} : memref<16x128xf32, #tpu.memory_space<vmem>>, vector<16x128xf32>,
    return
  }
  func.func @transform_0(%arg0: i32) -> (i32, i32) {
    %c0_i32 = arith.constant 0 : i32
    %c0_i32_0 = arith.constant 0 : i32
    return %c0_i32, %arg0 : i32, i32
  }
  func.func @transform_1(%arg0: i32) -> (i32, i32) {
    %c0_i32 = arith.constant 0 : i32
    %c0_i32_0 = arith.constant 0 : i32
    %c0_i32_1 = arith.constant 0 : i32
    return %c0_i32, %c0_i32_0 : i32, i32
  }
  func.func @transform_2(%arg0: i32) -> (i32, i32) {
    %c0_i32 = arith.constant 0 : i32
    %c0_i32_0 = arith.constant 0 : i32
    %c0_i32_1 = arith.constant 0 : i32
    return %c0_i32, %c0_i32_0 : i32, i32
  }
  func.func @transform_3(%arg0: i32) -> (i32, i32) {
    %c0_i32 = arith.constant 0 : i32
    %c0_i32_0 = arith.constant 0 : i32
    %c0_i32_1 = arith.constant 0 : i32
    return %c0_i32, %c0_i32_0 : i32, i32
  }
  func.func @transform_4(%arg0: i32) -> (i32, i32) {
    %c0_i32 = arith.constant 0 : i32
    %c0_i32_0 = arith.constant 0 : i32
    %c0_i32_1 = arith.constant 0 : i32
    return %c0_i32, %c0_i32_0 : i32, i32
  }
  func.func @transform_5(%arg0: i32) -> (i32, i32) {
    %c0_i32 = arith.constant 0 : i32
    %c0_i32_0 = arith.constant 0 : i32
    return %c0_i32, %arg0 : i32, i32
  }
}

</mosaic_0001>

<llo_original>
// kernel: tpu_custom_call.1
$region0: #{tpu_custom_call.1}
  #allocation0 [shape = 'u32[]', space=smem, size = 0x4, offset = 0x4, fixed_abs, tag = 'smem constant byte address 0x4 - core index']
  #allocation1 [shape = 'u32[144,128]{1,0:T(1,128)}', space=vmem, size = 0x12000, scoped, tag = 'internal scratch']
  %s0 = inlined_call_operand.hbm [shape: f32[16,256], index: 0, kind: input, shape index: {}]
  %s1 = inlined_call_operand.vmem [shape: f32[4,16], index: 1, kind: input, shape index: {}]
  %s2 = inlined_call_operand.vmem [shape: f32[4,1], index: 2, kind: input, shape index: {}]
  %s3 = inlined_call_operand.vmem [shape: f32[16,12], index: 3, kind: input, shape index: {}]
  %s4 = inlined_call_operand.vmem [shape: f32[16,1], index: 4, kind: input, shape index: {}]
  %s5 = inlined_call_operand.hbm [shape: f32[16,256], index: 5, kind: output, shape index: {}]
  %s6 = sld [smem:[#allocation0]]
  $region57: #{tpu_custom_call.1} parent=0
    _
  %s8 = ssub.s32 1, %s6
  %s9 = scalar_select 0, %s8, %s6
  $region1: #{tpu_custom_call.1} parent=0
    #allocation2 [shape = 'u8[16384]{0}', space=vmem, size = 0x4000, scoped, tag = 'input window, operand 0']
    #allocation3 [shape = 's32[2]{0}', space=sflag, size = 0x8, scoped, tag = 'scoped memory for tpu_custom_call.1']
    #allocation4 [shape = 's32[2]{0}', space=sflag, size = 0x8, scoped, tag = 'scoped memory for tpu_custom_call.1']
    #allocation5 [shape = 'u8[16384]{0}', space=vmem, size = 0x4000, scoped, tag = 'output window, operand 0']
    %10 = vsyncpa [#allocation3], 0
    %s11 = scalar_lea.sflag [#allocation3], 1
    %12 = vsyncpa %s11, 0
    %13 = vsyncpa [#allocation4], 0
    %s14 = scalar_lea.sflag [#allocation4], 1
    %15 = vsyncpa %s14, 0
    loop: start=0, step=1, limit=4
    $region2: #{tpu_custom_call.1} parent=1 // loop_pre_header
      _
    $region3: #{tpu_custom_call.1} parent=1 // loop_header
      %s17 = sphi 0, %s21
      %p18 = scmp.ge.s32.totalorder %s17, 4
      %s27 = sphi 0, %s29
      %s30 = sphi 0, %s27
      %s31 = sphi 0, %s30
      %s47 = sphi 0, %s31
      %s51 = sphi 0, %s51
      %s53 = sphi 0, %s51
      %s54 = sphi 0, %s53
      %s68 = sphi 0, %s54
      %s72 = sphi 0, %s72
      %s74 = sphi 0, %s72
      %s75 = sphi 0, %s74
      %s89 = sphi 0, %s75
      %s93 = sphi 0, %s93
      %s95 = sphi 0, %s93
      %s96 = sphi 0, %s95
      %s110 = sphi 0, %s96
      %s114 = sphi 0, %s114
      %s116 = sphi 0, %s114
      %s117 = sphi 0, %s116
      %s131 = sphi 0, %s117
      %s137 = sphi 0, %s139
      %s140 = sphi 0, %s137
      %s141 = sphi 0, %s140
      %s157 = sphi 0, %s141
    $region4: #{tpu_custom_call.1} parent=1 // loop_header_branch
      %20 = sbr.rel (%p18) target = $region8
    $region5: #{tpu_custom_call.1} parent=1 // loop_body
      %s22 = ssub.s32 %s17, 1
      %s23 = ssub.s32 %s17, 2
      %s24 = sadd.s32 %s17, 1
      %s25 = ssub.s32 %s17, %s24
      %p26 = scmp.eq.s32.totalorder %s25, 0
      %s28 = sadd.s32 %s27, 1
      %s29 = scalar_select %p26, %s27, %s28
      %p32 = pneg %p26
      %p33 = scmp.eq.s32.totalorder %s17, 1
      %p34 = por %p32, %p33
      %p35 = scmp.ne.s32.totalorder %s27, %s30
      %p36 = scmp.eq.s32.totalorder %s17, 0
      %p37 = por %p35, %p36
      %p38 = scmp.ne.s32.totalorder %s27, %s30
      %p39 = scmp.eq.s32.totalorder %s22, 1
      %p40 = por %p38, %p39
      %p41 = scmp.ne.s32.totalorder %s30, %s31
      %p42 = scmp.eq.s32.totalorder %s22, 0
      %p43 = por %p41, %p42
      %p44 = scmp.ne.s32.totalorder %s30, %s31
      %p45 = scmp.eq.s32.totalorder %s23, 1
      %p46 = por %p44, %p45
      %p48 = scmp.ne.s32.totalorder %s31, %s47
      %p49 = scmp.eq.s32.totalorder %s23, 0
      %p50 = por %p48, %p49
      %s52 = sadd.s32 %s51, 1
      %p55 = scmp.eq.s32.totalorder %s17, 1
      %p56 = scmp.ne.s32.totalorder %s51, %s53
      %p57 = scmp.eq.s32.totalorder %s17, 0
      %p58 = por %p56, %p57
      %p59 = scmp.ne.s32.totalorder %s51, %s53
      %p60 = scmp.eq.s32.totalorder %s22, 1
      %p61 = por %p59, %p60
      %p62 = scmp.ne.s32.totalorder %s53, %s54
      %p63 = scmp.eq.s32.totalorder %s22, 0
      %p64 = por %p62, %p63
      %p65 = scmp.ne.s32.totalorder %s53, %s54
      %p66 = scmp.eq.s32.totalorder %s23, 1
      %p67 = por %p65, %p66
      %p69 = scmp.ne.s32.totalorder %s54, %s68
      %p70 = scmp.eq.s32.totalorder %s23, 0
      %p71 = por %p69, %p70
      %s73 = sadd.s32 %s72, 1
      %p76 = scmp.eq.s32.totalorder %s17, 1
      %p77 = scmp.ne.s32.totalorder %s72, %s74
      %p78 = scmp.eq.s32.totalorder %s17, 0
      %p79 = por %p77, %p78
      %p80 = scmp.ne.s32.totalorder %s72, %s74
      %p81 = scmp.eq.s32.totalorder %s22, 1
      %p82 = por %p80, %p81
      %p83 = scmp.ne.s32.totalorder %s74, %s75
      %p84 = scmp.eq.s32.totalorder %s22, 0
      %p85 = por %p83, %p84
      %p86 = scmp.ne.s32.totalorder %s74, %s75
      %p87 = scmp.eq.s32.totalorder %s23, 1
      %p88 = por %p86, %p87
      %p90 = scmp.ne.s32.totalorder %s75, %s89
      %p91 = scmp.eq.s32.totalorder %s23, 0
      %p92 = por %p90, %p91
      %s94 = sadd.s32 %s93, 1
      %p97 = scmp.eq.s32.totalorder %s17, 1
      %p98 = scmp.ne.s32.totalorder %s93, %s95
      %p99 = scmp.eq.s32.totalorder %s17, 0
      %p100 = por %p98, %p99
      %p101 = scmp.ne.s32.totalorder %s93, %s95
      %p102 = scmp.eq.s32.totalorder %s22, 1
      %p103 = por %p101, %p102
      %p104 = scmp.ne.s32.totalorder %s95, %s96
      %p105 = scmp.eq.s32.totalorder %s22, 0
      %p106 = por %p104, %p105
      %p107 = scmp.ne.s32.totalorder %s95, %s96
      %p108 = scmp.eq.s32.totalorder %s23, 1
      %p109 = por %p107, %p108
      %p111 = scmp.ne.s32.totalorder %s96, %s110
      %p112 = scmp.eq.s32.totalorder %s23, 0
      %p113 = por %p111, %p112
      %s115 = sadd.s32 %s114, 1
      %p118 = scmp.eq.s32.totalorder %s17, 1
      %p119 = scmp.ne.s32.totalorder %s114, %s116
      %p120 = scmp.eq.s32.totalorder %s17, 0
      %p121 = por %p119, %p120
      %p122 = scmp.ne.s32.totalorder %s114, %s116
      %p123 = scmp.eq.s32.totalorder %s22, 1
      %p124 = por %p122, %p123
      %p125 = scmp.ne.s32.totalorder %s116, %s117
      %p126 = scmp.eq.s32.totalorder %s22, 0
      %p127 = por %p125, %p126
      %p128 = scmp.ne.s32.totalorder %s116, %s117
      %p129 = scmp.eq.s32.totalorder %s23, 1
      %p130 = por %p128, %p129
      %p132 = scmp.ne.s32.totalorder %s117, %s131
      %p133 = scmp.eq.s32.totalorder %s23, 0
      %p134 = por %p132, %p133
      %s135 = ssub.s32 %s17, %s24
      %p136 = scmp.eq.s32.totalorder %s135, 0
      %s138 = sadd.s32 %s137, 1
      %s139 = scalar_select %p136, %s137, %s138
      %p142 = pneg %p136
      %p143 = scmp.eq.s32.totalorder %s17, 1
      %p144 = por %p142, %p143
      %p145 = scmp.ne.s32.totalorder %s137, %s140
      %p146 = scmp.eq.s32.totalorder %s17, 0
      %p147 = por %p145, %p146
      %p148 = scmp.ne.s32.totalorder %s137, %s140
      %p149 = scmp.eq.s32.totalorder %s22, 1
      %p150 = por %p148, %p149
      %p151 = scmp.ne.s32.totalorder %s140, %s141
      %p152 = scmp.eq.s32.totalorder %s22, 0
      %p153 = por %p151, %p152
      %p154 = scmp.ne.s32.totalorder %s140, %s141
      %p155 = scmp.eq.s32.totalorder %s23, 1
      %p156 = por %p154, %p155
      %p158 = scmp.ne.s32.totalorder %s141, %s157
      %p159 = scmp.eq.s32.totalorder %s23, 0
      %p160 = por %p158, %p159
      %p161 = scmp.le.s32.totalorder 1, %s17
      %p162 = scmp.lt.s32.totalorder %s17, 3
      %p163 = pnand %p161, %p162
      %p164 = pneg %p163
      // Predicated region
      $region9: #{tpu_custom_call.1} parent=5 // pred_check
        _
      $region10: #{tpu_custom_call.1} parent=5 // pred_check_branch
        %166 = sbr.rel (%p163) target = $region12
      $region11: #{tpu_custom_call.1} parent=5 // pred_region
        %s167 = ssub.s32 %s17, 1
        // Predicated region
        $region13: #{tpu_custom_call.1} parent=11 // pred_check
          %p168 = pneg %p64
        $region14: #{tpu_custom_call.1} parent=11 // pred_check_branch
          %170 = sbr.rel (%p168) target = $region16
        $region15: #{tpu_custom_call.1} parent=11 // pred_region
          _
        $region16: #{tpu_custom_call.1} parent=11 // pred_fallthru
          _
        // Predicated region
        $region17: #{tpu_custom_call.1} parent=11 // pred_check
          %p171 = pneg %p85
        $region18: #{tpu_custom_call.1} parent=11 // pred_check_branch
          %173 = sbr.rel (%p171) target = $region20
        $region19: #{tpu_custom_call.1} parent=11 // pred_region
          _
        $region20: #{tpu_custom_call.1} parent=11 // pred_fallthru
          _
        // Predicated region
        $region21: #{tpu_custom_call.1} parent=11 // pred_check
          %p174 = pneg %p106
        $region22: #{tpu_custom_call.1} parent=11 // pred_check_branch
          %176 = sbr.rel (%p174) target = $region24
        $region23: #{tpu_custom_call.1} parent=11 // pred_region
          _
        $region24: #{tpu_custom_call.1} parent=11 // pred_fallthru
          _
        // Predicated region
        $region25: #{tpu_custom_call.1} parent=11 // pred_check
          %p177 = pneg %p127
        $region26: #{tpu_custom_call.1} parent=11 // pred_check_branch
          %179 = sbr.rel (%p177) target = $region28
        $region27: #{tpu_custom_call.1} parent=11 // pred_region
          _
        $region28: #{tpu_custom_call.1} parent=11 // pred_fallthru
          _
      $region12: #{tpu_custom_call.1} parent=5 // pred_fallthru
        _
      %p180 = scmp.lt.s32.totalorder %s17, 2
      // Predicated region
      $region29: #{tpu_custom_call.1} parent=5 // pred_check
        %p181 = pneg %p180
      $region30: #{tpu_custom_call.1} parent=5 // pred_check_branch
        %183 = sbr.rel (%p181) target = $region32
      $region31: #{tpu_custom_call.1} parent=5 // pred_region
        // Predicated region
        $region33: #{tpu_custom_call.1} parent=31 // pred_check
          %p184 = pneg %p37
        $region34: #{tpu_custom_call.1} parent=31 // pred_check_branch
          %186 = sbr.rel (%p184) target = $region36
        $region35: #{tpu_custom_call.1} parent=31 // pred_region
          %s187 = sand.u32 %s27, 1
          %s188 = scalar_lea.sflag [#allocation3], %s187
          %s189 = sand.u32 %s27, 1
          %s190 = smul.addr %s189, 16
          %s191 = scalar_lea.vmem [#allocation2], %s190
          %s193 = ssub.s32 256, 256
          %194 = vsyncadd %s188, %s193
          %s195 = smul.addr %s17, 128
          %s196 = scalar_lea.hbm %s0, %s195
          %s197 = sshll.u32 %s191, 4
          %s198 = int_to_ptr.vmem [resolvable:$true] %s197
          %203 = dma.hbm_to_vmem [thread:$0]  %s196, 256, %s198, %s188, 256, 128, 8
        $region36: #{tpu_custom_call.1} parent=31 // pred_fallthru
          _
      $region32: #{tpu_custom_call.1} parent=5 // pred_fallthru
        _
      %p204 = scmp.le.s32.totalorder 1, %s17
      %p205 = scmp.lt.s32.totalorder %s17, 3
      %p206 = pnand %p204, %p205
      %p207 = pneg %p206
      // Predicated region
      $region37: #{tpu_custom_call.1} parent=5 // pred_check
        _
      $region38: #{tpu_custom_call.1} parent=5 // pred_check_branch
        %209 = sbr.rel (%p206) target = $region40
      $region39: #{tpu_custom_call.1} parent=5 // pred_region
        %s210 = ssub.s32 %s17, 1
        %s211 = sand.u32 %s30, 1
        %s212 = scalar_lea.sflag [#allocation3], %s211
        %s213 = sand.u32 %s30, 1
        %s214 = smul.addr %s213, 16
        %s215 = scalar_lea.vmem [#allocation2], %s214
        // Predicated region
        $region41: #{tpu_custom_call.1} parent=39 // pred_check
          %p216 = pneg %p43
        $region42: #{tpu_custom_call.1} parent=39 // pred_check_branch
          %218 = sbr.rel (%p216) target = $region44
        $region43: #{tpu_custom_call.1} parent=39 // pred_region
          %219 = dma.done %s212, 256
        $region44: #{tpu_custom_call.1} parent=39 // pred_fallthru
          _
        %s220 = sand.u32 %s30, 1
        %s221 = scalar_lea.sflag [#allocation3], %s220
        %s222 = sand.u32 %s30, 1
        %s223 = smul.addr %s222, 16
        %s224 = scalar_lea.vmem [#allocation2], %s223
        %p225 = pneg %p43
        %p226 = pneg %p40
        %p227 = pneg %p64
        %p228 = pneg %p61
        %p229 = pneg %p85
        %p230 = pneg %p82
        %p231 = pneg %p106
        %p232 = pneg %p103
        %p233 = pneg %p127
        %p234 = pneg %p124
        %p235 = pneg %p153
        %p236 = pneg %p150
        %s237 = sand.u32 %s140, 1
        %s238 = scalar_lea.sflag [#allocation4], %s237
        %s239 = sand.u32 %s140, 1
        %s240 = smul.addr %s239, 16
        %s241 = scalar_lea.vmem [#allocation5], %s240
        %v242 = vld [vmem:[%s215] sm:$0xff]
        %v243 = vld [vmem:[%s215 + $0x8] sm:$0xff]
        %v244 = vld [vmem:[%s1] sm:$0xf]
        %v245 = vld [vmem:[%s2] sm:$0xf]
        %247 = vset.pattern.permute.xlu0 0
        %248 = vperm.xlu0 %247, %v245
        %v249 = vpop.permute.xlu0 %248
        %vm251 = vcmask 130048
        %v253 = vsel %vm251, %v244, 0
        %255 = vmatprep.subr.mxu0 0.0
        %256 = vmatpush1.msra.mxu0 %v242
        %257 = vmatprep.subr.mxu0 0.0
        %258 = vmatpush1.msra.mxu0 %v243
        %259 = vmatprep.subr.mxu0 0.0
        %260 = vmatpush1.msra.mxu0 0.0
        %261 = vmatprep.subr.mxu0 0.0
        %262 = vmatpush1.msra.mxu0 0.0
        %263 = vmatprep.subr.mxu0 0.0
        %264 = vmatpush1.msra.mxu0 0.0
        %265 = vmatprep.subr.mxu0 0.0
        %266 = vmatpush1.msra.mxu0 0.0
        %267 = vmatprep.subr.mxu0 0.0
        %268 = vmatpush1.msra.mxu0 0.0
        %269 = vmatprep.subr.mxu0 0.0
        %270 = vmatpush1.msra.mxu0 0.0
        %271 = vmatprep.subr.mxu0 0.0
        %272 = vmatpush1.msra.mxu0 0.0
        %273 = vmatprep.subr.mxu0 0.0
        %274 = vmatpush1.msra.mxu0 0.0
        %275 = vmatprep.subr.mxu0 0.0
        %276 = vmatpush1.msra.mxu0 0.0
        %277 = vmatprep.subr.mxu0 0.0
        %278 = vmatpush1.msra.mxu0 0.0
        %279 = vmatprep.subr.mxu0 0.0
        %280 = vmatpush1.msra.mxu0 0.0
        %281 = vmatprep.subr.mxu0 0.0
        %282 = vmatpush1.msra.mxu0 0.0
        %283 = vmatprep.subr.mxu0 0.0
        %284 = vmatpush1.msra.mxu0 0.0
        %285 = vmatprep.subr.mxu0 0.0
        %286 = vmatpush1.msra.mxu0 0.0
        %287 = vmatprep.subr.mxu0 0.0
        %288 = vmatpush1.msra.mxu0 0.0
        %289 = vmatprep.subr.mxu0 0.0
        %290 = vmatpush1.msra.mxu0 0.0
        %291 = vmatprep.subr.mxu0 0.0
        %292 = vmatpush1.msra.mxu0 0.0
        %293 = vmatprep.subr.mxu0 0.0
        %294 = vmatpush1.msra.mxu0 0.0
        %295 = vmatprep.subr.mxu0 0.0
        %296 = vmatpush1.msra.mxu0 0.0
        %297 = vmatprep.subr.mxu0 0.0
        %298 = vmatpush1.msra.mxu0 0.0
        %299 = vmatprep.subr.mxu0 0.0
        %300 = vmatpush1.msra.mxu0 0.0
        %301 = vmatprep.subr.mxu0 0.0
        %302 = vmatpush1.msra.mxu0 0.0
        %303 = vmatprep.subr.mxu0 0.0
        %304 = vmatpush1.msra.mxu0 0.0
        %305 = vmatprep.subr.mxu0 0.0
        %306 = vmatpush1.msra.mxu0 0.0
        %307 = vmatprep.subr.mxu0 0.0
        %308 = vmatpush1.msra.mxu0 0.0
        %309 = vmatprep.subr.mxu0 0.0
        %310 = vmatpush1.msra.mxu0 0.0
        %311 = vmatprep.subr.mxu0 0.0
        %312 = vmatpush1.msra.mxu0 0.0
        %313 = vmatprep.subr.mxu0 0.0
        %314 = vmatpush1.msra.mxu0 0.0
        %315 = vmatprep.subr.mxu0 0.0
        %316 = vmatpush1.msra.mxu0 0.0
        %317 = vmatprep.subr.mxu0 0.0
        %318 = vmatpush1.msra.mxu0 0.0
        %319 = vmatprep.mubr.f32.mxu0 0.0
        %320 = vmatmul.mubr.f32.gmra.mrb[0].mxu0 %v253
        %v321 = vpop.f32.mrb[0].mxu0
        %v322 = vadd.f32 %v249, %v321
        %v323 = vpop.f32.mrb[0].mxu0
        %324 = vdwg.mxu0
        %v325 = vmax.f32 %v322, 0.0
        %v326 = vlaneseq
        %v327 = vand.u32 %v326, 127
        %vm328 = vcmp.ge.s32.totalorder %v327, 1
        %329 = vrot.lane.b32.xlu0 %v325, 1
        %v330 = vpop.permute.xlu0 %329
        %v331 = vsel %vm328, 1, 0
        %vm332 = vcmp.eq.s32.totalorder %v331, 1
        %v333 = vsel %vm332, %v330, 0.0
        %vm334 = vcmp.le.s32.totalorder %v327, 126
        %335 = vrot.lane.b32.xlu0 %v325, 127
        %v336 = vpop.permute.xlu0 %335
        %v337 = vsel %vm334, 1, 0
        %vm338 = vcmp.eq.s32.totalorder %v337, 1
        %v339 = vsel %vm338, %v336, 0.0
        %v341 = vrot.slane %v325, 4
        %vm343 = vcmask 1043456
        %v344 = vsel %vm343, %v333, %v341
        %v345 = vld [vmem:[%s3] sm:$0xff]
        %v346 = vld [vmem:[%s3 + $0x8] sm:$0xff]
        %v347 = vld [vmem:[%s4] sm:$0xff]
        %v348 = vld [vmem:[%s4 + $0x8] sm:$0xff]
        %350 = vset.pattern.permute.xlu0 0
        %351 = vperm.xlu0 %350, %v347
        %v352 = vpop.permute.xlu0 %351
        %355 = vset.pattern.permute.xlu0 0
        %356 = vperm.xlu0 %355, %v348
        %v357 = vpop.permute.xlu0 %356
        %vm359 = vcmask 97280
        %v361 = vsel %vm359, %v345, 0
        %v364 = vsel %vm359, %v346, 0
        %v367 = vsel %vm343, %v339, 0
        %369 = vmatprep.subr.mxu0 0.0
        %370 = vmatpush1.msra.mxu0 %v344
        %371 = vmatprep.subr.mxu0 0.0
        %372 = vmatpush1.msra.mxu0 %v367
        %373 = vmatprep.subr.mxu0 0.0
        %374 = vmatpush1.msra.mxu0 0.0
        %375 = vmatprep.subr.mxu0 0.0
        %376 = vmatpush1.msra.mxu0 0.0
        %377 = vmatprep.subr.mxu0 0.0
        %378 = vmatpush1.msra.mxu0 0.0
        %379 = vmatprep.subr.mxu0 0.0
        %380 = vmatpush1.msra.mxu0 0.0
        %381 = vmatprep.subr.mxu0 0.0
        %382 = vmatpush1.msra.mxu0 0.0
        %383 = vmatprep.subr.mxu0 0.0
        %384 = vmatpush1.msra.mxu0 0.0
        %385 = vmatprep.subr.mxu0 0.0
        %386 = vmatpush1.msra.mxu0 0.0
        %387 = vmatprep.subr.mxu0 0.0
        %388 = vmatpush1.msra.mxu0 0.0
        %389 = vmatprep.subr.mxu0 0.0
        %390 = vmatpush1.msra.mxu0 0.0
        %391 = vmatprep.subr.mxu0 0.0
        %392 = vmatpush1.msra.mxu0 0.0
        %393 = vmatprep.subr.mxu0 0.0
        %394 = vmatpush1.msra.mxu0 0.0
        %395 = vmatprep.subr.mxu0 0.0
        %396 = vmatpush1.msra.mxu0 0.0
        %397 = vmatprep.subr.mxu0 0.0
        %398 = vmatpush1.msra.mxu0 0.0
        %399 = vmatprep.subr.mxu0 0.0
        %400 = vmatpush1.msra.mxu0 0.0
        %401 = vmatprep.subr.mxu0 0.0
        %402 = vmatpush1.msra.mxu0 0.0
        %403 = vmatprep.subr.mxu0 0.0
        %404 = vmatpush1.msra.mxu0 0.0
        %405 = vmatprep.subr.mxu0 0.0
        %406 = vmatpush1.msra.mxu0 0.0
        %407 = vmatprep.subr.mxu0 0.0
        %408 = vmatpush1.msra.mxu0 0.0
        %409 = vmatprep.subr.mxu0 0.0
        %410 = vmatpush1.msra.mxu0 0.0
        %411 = vmatprep.subr.mxu0 0.0
        %412 = vmatpush1.msra.mxu0 0.0
        %413 = vmatprep.subr.mxu0 0.0
        %414 = vmatpush1.msra.mxu0 0.0
        %415 = vmatprep.subr.mxu0 0.0
        %416 = vmatpush1.msra.mxu0 0.0
        %417 = vmatprep.subr.mxu0 0.0
        %418 = vmatpush1.msra.mxu0 0.0
        %419 = vmatprep.subr.mxu0 0.0
        %420 = vmatpush1.msra.mxu0 0.0
        %421 = vmatprep.subr.mxu0 0.0
        %422 = vmatpush1.msra.mxu0 0.0
        %423 = vmatprep.subr.mxu0 0.0
        %424 = vmatpush1.msra.mxu0 0.0
        %425 = vmatprep.subr.mxu0 0.0
        %426 = vmatpush1.msra.mxu0 0.0
        %427 = vmatprep.subr.mxu0 0.0
        %428 = vmatpush1.msra.mxu0 0.0
        %429 = vmatprep.subr.mxu0 0.0
        %430 = vmatpush1.msra.mxu0 0.0
        %431 = vmatprep.subr.mxu0 0.0
        %432 = vmatpush1.msra.mxu0 0.0
        %433 = vmatprep.mubr.f32.mxu0 0.0
        %434 = vmatmul.mubr.f32.gmra.mrb[0].mxu0 %v361
        %v435 = vpop.f32.mrb[0].mxu0
        %v436 = vadd.f32 %v352, %v435
        %v437 = vpop.f32.mrb[0].mxu0
        %438 = vmatprep.mubr.f32.mxu0 0.0
        %439 = vmatmul.mubr.f32.gmra.mrb[0].mxu0 %v364
        %v440 = vpop.f32.mrb[0].mxu0
        %v441 = vadd.f32 %v357, %v440
        %v442 = vpop.f32.mrb[0].mxu0
        %443 = vdwg.mxu0
        %v444 = vadd.f32 %v242, %v436
        %v445 = vadd.f32 %v243, %v441
        %v446 = vmax.f32 %v444, 0.0
        %v447 = vmax.f32 %v445, 0.0
        %448 = vst [vmem:[%s241] sm:$0xff] %v446
        %449 = vst [vmem:[%s241 + $0x8] sm:$0xff] %v447
        %s450 = sand.u32 %s140, 1
        %s451 = scalar_lea.sflag [#allocation4], %s450
        %s452 = sand.u32 %s140, 1
        %s453 = smul.addr %s452, 16
        %s454 = scalar_lea.vmem [#allocation5], %s453
        // Predicated region
        $region45: #{tpu_custom_call.1} parent=39 // pred_check
          %p455 = pneg %p150
        $region46: #{tpu_custom_call.1} parent=39 // pred_check_branch
          %457 = sbr.rel (%p455) target = $region48
        $region47: #{tpu_custom_call.1} parent=39 // pred_region
          %s459 = ssub.s32 256, 256
          %460 = vsyncadd %s451, %s459
          %s461 = smul.addr %s22, 128
          %s462 = scalar_lea.hbm %s5, %s461
          %s463 = sshll.u32 %s454, 4
          %s464 = int_to_ptr.vmem [resolvable:$true] %s463
          %469 = dma.vmem_to_hbm [thread:$0]  %s464, 256, %s462, %s451, 128, 256, 8
        $region48: #{tpu_custom_call.1} parent=39 // pred_fallthru
          _
      $region40: #{tpu_custom_call.1} parent=5 // pred_fallthru
        _
      %p470 = scmp.le.s32.totalorder 2, %s17
      // Predicated region
      $region49: #{tpu_custom_call.1} parent=5 // pred_check
        %p471 = pneg %p470
      $region50: #{tpu_custom_call.1} parent=5 // pred_check_branch
        %473 = sbr.rel (%p471) target = $region52
      $region51: #{tpu_custom_call.1} parent=5 // pred_region
        %s474 = ssub.s32 %s17, 2
        // Predicated region
        $region53: #{tpu_custom_call.1} parent=51 // pred_check
          %p475 = pneg %p156
        $region54: #{tpu_custom_call.1} parent=51 // pred_check_branch
          %477 = sbr.rel (%p475) target = $region56
        $region55: #{tpu_custom_call.1} parent=51 // pred_region
          %s478 = sand.u32 %s141, 1
          %s479 = scalar_lea.sflag [#allocation4], %s478
          %s480 = sand.u32 %s141, 1
          %s481 = smul.addr %s480, 16
          %s482 = scalar_lea.vmem [#allocation5], %s481
          %483 = dma.done %s479, 256
        $region56: #{tpu_custom_call.1} parent=51 // pred_fallthru
          _
      $region52: #{tpu_custom_call.1} parent=5 // pred_fallthru
        _
    $region6: #{tpu_custom_call.1} parent=1 // loop_footer
      %s21 = sadd.s32 1, %s17
    $region7: #{tpu_custom_call.1} parent=1 // loop_footer_branch
      %16 = sbr.rel target = $region3
    $region8: #{tpu_custom_call.1} parent=1 // loop_exit
      _
    %484 = vsyncpa [#allocation3], 1
    %s485 = scalar_lea.sflag [#allocation3], 1
    %486 = vsyncpa %s485, 1
    %487 = vsyncpa [#allocation4], 1
    %s488 = scalar_lea.sflag [#allocation4], 1
    %489 = vsyncpa %s488, 1

</llo_original>
